<compile_context>
chip_gen: v5e
topology: v5e:2x2
jax: 0.10.0
libtpu: 0.0.40
codegen_flags: <defaults>
</compile_context>

<pallas_src>
import jax
import jax.numpy as jnp
from jax.experimental import pallas as pl
from jax.experimental.pallas import tpu as pltpu


def _copy_kernel(x_ref, o_ref):
    # Pure identity copy; the (n, c, t) -> (n, t, c) permutation is done by the
    # BlockSpec DMAs, so the TensorCore does nothing but a dense block copy.
    o_ref[...] = x_ref[...]


def _vmem_capacity_bytes():
    try:
        return int(pltpu.get_tpu_info().vmem_capacity_bytes)
    except Exception:
        return 64 * 1024 * 1024  # conservative default: v7x per-TC VMEM


def _round_up(x, m):
    return (x + m - 1) // m * m


def _pick_batch_block(n, per_sample_block_bytes, target_bytes, budget_bytes):
    """Largest divisor Nb of n whose double-buffered in+out blocks fit VMEM."""
    best = 1
    for d in range(1, n + 1):
        if n % d:
            continue
        if (4 * d * per_sample_block_bytes <= budget_bytes
                and d * per_sample_block_bytes <= target_bytes):
            best = d
    return best


def stack_clip_in_channels(x, *, force_unflattened=False):
    """x: (N, C, T, H, W) -> (N, T*C, H, W) with out[n, t*C+c] = x[n, c, t]."""
    N, C, T, H, W = x.shape
    HW = H * W
    itemsize = jnp.dtype(x.dtype).itemsize

    vmem_cap = _vmem_capacity_bytes()
    budget = int(0.35 * vmem_cap)      # for 2x-double-buffered input + output
    target = 8 * 1024 * 1024           # 1-8 MiB blocks saturate HBM bandwidth

    lane_dense = (HW % 128 == 0) and not force_unflattened

    # Padding-aware per-sample block footprint (sublane -> x8, lane -> x128).
    if lane_dense:
        per_sample = _round_up(C, 8) * HW * itemsize                 # (C, HW)
    else:
        per_sample = C * _round_up(H, 8) * _round_up(W, 128) * itemsize  # (C,H,W)

    nb = _pick_batch_block(N, per_sample, target, budget)
    block_bytes = nb * per_sample
    vmem_limit = int(min(0.5 * vmem_cap,
                         max(4 * block_bytes + 2 * 1024 * 1024,
                             16 * 1024 * 1024)))

    cparams = pltpu.CompilerParams(
        dimension_semantics=("parallel", "parallel"),
        vmem_limit_bytes=vmem_limit,
    )

    if lane_dense:
        # Lane-dense path. x viewed as (N, C, T*HW); t-selection is a
        # 128-aligned element offset t*HW along the last dim. Output produced
        # as (N, T, C, HW) so its block minor dims (C, HW) are the full dims.
        x3 = x.reshape(N, C, T * HW)  # contiguous, zero cost
        out4 = pl.pallas_call(
            _copy_kernel,
            out_shape=jax.ShapeDtypeStruct((N, T, C, HW), x.dtype),
            grid=(N // nb, T),
            in_specs=[
                pl.BlockSpec((nb, C, HW), lambda n, t: (n, 0, t)),
            ],
            out_specs=pl.BlockSpec(
                (nb, pl.Squeezed(), C, HW), lambda n, t: (n, t, 0, 0)
            ),
            compiler_params=cparams,
        )(x3)
        return out4.reshape(N, T * C, H, W)  # contiguous, zero cost

    # Fallback (HW not a multiple of 128): keep (H, W) as the minor block dims
    # (always the full array dims => always a legal block), slice T as a
    # leading size-1 dim. Still a pure identity-copy kernel.
    out5 = pl.pallas_call(
        _copy_kernel,
        out_shape=jax.ShapeDtypeStruct((N, T, C, H, W), x.dtype),
        grid=(N // nb, T),
        in_specs=[
            pl.BlockSpec(
                (nb, C, pl.Squeezed(), H, W), lambda n, t: (n, 0, t, 0, 0)
            ),
        ],
        out_specs=pl.BlockSpec(
            (nb, pl.Squeezed(), C, H, W), lambda n, t: (n, t, 0, 0, 0)
        ),
        compiler_params=cparams,
    )(x)
    return out5.reshape(N, T * C, H, W)


def _reference(x):
    N, C, T, H, W = x.shape
    return jnp.transpose(x, (0, 2, 1, 3, 4)).reshape(N, T * C, H, W)


if __name__ == "__main__":
    key = jax.random.PRNGKey(0)

    # Primary lane-dense path (H*W = 256, multiple of 128).
    N, C, T, H, W = 2, 3, 4, 16, 16
    x = jax.random.normal(key, (N, C, T, H, W), dtype=jnp.float32)
    out = jax.block_until_ready(stack_clip_in_channels(x))
    assert out.shape == (N, T * C, H, W), out.shape
    assert jnp.array_equal(out, _reference(x)), "mismatch (lane-dense path)"

    # Fallback path (H*W = 96, not a multiple of 128).
    x2 = jax.random.normal(jax.random.PRNGKey(0), (2, 3, 4, 8, 12),
                           dtype=jnp.float32)
    out2 = jax.block_until_ready(stack_clip_in_channels(x2))
    assert jnp.array_equal(out2, _reference(x2)), "mismatch (fallback path)"

    print("KERNEL_OK")
</pallas_src>

<mosaic_0001>
module attributes {stable_mosaic.version = 11 : i64} {
  func.func @_copy_kernel(%arg0: i32, %arg1: i32, %arg2: memref<2x3x256xf32, #tpu.memory_space<vmem>>, %arg3: memref<2x1x3x256xf32, #tpu.memory_space<vmem>>) attributes {dimension_semantics = [#tpu.dimension_semantics<parallel>, #tpu.dimension_semantics<parallel>], iteration_bounds = array<i64: 1, 4>, scalar_prefetch = 0 : i64, scratch_operands = 0 : i64, tpu.core_type = #tpu.core_type<tc>, window_params = [{transform_indices = @transform_0, window_bounds = array<i64: 2, 3, 256>}, {transform_indices = @transform_1, window_bounds = array<i64: 2, 1, 3, 256>}]} {
    %c0 = arith.constant 0 : index
    %c0_0 = arith.constant 0 : index
    %c0_1 = arith.constant 0 : index
    %0 = vector.load %arg2[%c0, %c0_0, %c0_1] : memref<2x3x256xf32, #tpu.memory_space<vmem>>, vector<2x3x256xf32>
    %c0_2 = arith.constant 0 : index
    %c0_3 = arith.constant 0 : index
    %c0_4 = arith.constant 0 : index
    %c0_5 = arith.constant 0 : index
    %1 = vector.load %arg3[%c0_2, %c0_3, %c0_4, %c0_5] : memref<2x1x3x256xf32, #tpu.memory_space<vmem>>, vector<2x1x3x256xf32>
    %2 = vector.shape_cast %1 : vector<2x1x3x256xf32> to vector<2x3x256xf32>
    %3 = vector.shape_cast %0 : vector<2x3x256xf32> to vector<2x1x3x256xf32>
    tpu.vector_store %arg3[%c0_2, %c0_3, %c0_4, %c0_5], %3 {strides = array<i32>} : memref<2x1x3x256xf32, #tpu.memory_space<vmem>>, vector<2x1x3x256xf32>,
    return
  }
  func.func @transform_0(%arg0: i32, %arg1: i32) -> (i32, i32, i32) {
    %c0_i32 = arith.constant 0 : i32
    %c0_i32_0 = arith.constant 0 : i32
    return %arg0, %c0_i32, %arg1 : i32, i32, i32
  }
  func.func @transform_1(%arg0: i32, %arg1: i32) -> (i32, i32, i32, i32) {
    %c0_i32 = arith.constant 0 : i32
    %c0_i32_0 = arith.constant 0 : i32
    %c0_i32_1 = arith.constant 0 : i32
    return %arg0, %arg1, %c0_i32, %c0_i32_0 : i32, i32, i32, i32
  }
}

</mosaic_0001>

<llo_original>
// kernel: tpu_custom_call.1
$region0: #{tpu_custom_call.1}
  #allocation0 [shape = 'u32[]', space=smem, size = 0x4, offset = 0x4, fixed_abs, tag = 'smem constant byte address 0x4 - core index']
  #allocation1 [shape = 'u32[72,128]{1,0:T(1,128)}', space=vmem, size = 0x9000, scoped, tag = 'internal scratch']
  %s0 = inlined_call_operand.vmem [shape: f32[2,3,1024], index: 0, kind: input, shape index: {}]
  %s1 = inlined_call_operand.vmem [shape: f32[2,4,3,256], index: 1, kind: output, shape index: {}]
  %s2 = sld [smem:[#allocation0]]
  $region109: #{tpu_custom_call.1} parent=0
    _
  %s4 = ssub.s32 1, %s2
  %s5 = scalar_select 0, %s4, %s2
  $region1: #{tpu_custom_call.1} parent=0
    #allocation2 [shape = 'u8[16384]{0}', space=vmem, size = 0x4000, scoped, tag = 'input window, operand 0']
    #allocation3 [shape = 'u8[16384]{0}', space=vmem, size = 0x4000, scoped, tag = 'output window, operand 0']
    loop: start=0, step=1, limit=6
    $region2: #{tpu_custom_call.1} parent=1 // loop_pre_header
      _
    $region3: #{tpu_custom_call.1} parent=1 // loop_header
      %s7 = sphi 0, %s11
      %p8 = scmp.ge.s32.totalorder %s7, 6
      %s14 = sphi 0, %s26
      %s15 = sphi 0, %s22
      %s16 = sphi 0, %s14
      %s17 = sphi 0, %s15
      %s18 = sphi 0, %s16
      %s19 = sphi 0, %s17
      %s31 = sphi 0, %s33
      %s34 = sphi 0, %s31
      %s35 = sphi 0, %s34
      %s51 = sphi 0, %s35
      %s59 = sphi 0, %s61
      %s62 = sphi 0, %s59
      %s63 = sphi 0, %s62
      %s79 = sphi 0, %s63
    $region4: #{tpu_custom_call.1} parent=1 // loop_header_branch
      %10 = sbr.rel (%p8) target = $region8
    $region5: #{tpu_custom_call.1} parent=1 // loop_body
      %s12 = ssub.s32 %s7, 1
      %s13 = ssub.s32 %s7, 2
      %s20 = sadd.s32 1, %s15
      %p21 = scmp.ge.s32.totalorder %s20, 4
      %s22 = scalar_select %p21, 0, %s20
      %s23 = sadd.s32 1, %s14
      %s24 = scalar_select %p21, %s23, %s14
      %p25 = scmp.ge.s32.totalorder %s24, 1
      %s26 = scalar_select %p25, 0, %s24
      %s27 = ssub.s32 %s14, %s26
      %s28 = ssub.s32 %s15, %s22
      %s29 = sor.u32 %s27, %s28
      %p30 = scmp.eq.s32.totalorder %s29, 0
      %s32 = sadd.s32 %s31, 1
      %s33 = scalar_select %p30, %s31, %s32
      %p36 = pneg %p30
      %p37 = scmp.eq.s32.totalorder %s7, 3
      %p38 = por %p36, %p37
      %p39 = scmp.ne.s32.totalorder %s31, %s34
      %p40 = scmp.eq.s32.totalorder %s7, 0
      %p41 = por %p39, %p40
      %p42 = scmp.ne.s32.totalorder %s31, %s34
      %p43 = scmp.eq.s32.totalorder %s12, 3
      %p44 = por %p42, %p43
      %p45 = scmp.ne.s32.totalorder %s34, %s35
      %p46 = scmp.eq.s32.totalorder %s12, 0
      %p47 = por %p45, %p46
      %p48 = scmp.ne.s32.totalorder %s34, %s35
      %p49 = scmp.eq.s32.totalorder %s13, 3
      %p50 = por %p48, %p49
      %p52 = scmp.ne.s32.totalorder %s35, %s51
      %p53 = scmp.eq.s32.totalorder %s13, 0
      %p54 = por %p52, %p53
      %s55 = ssub.s32 %s14, %s26
      %s56 = ssub.s32 %s15, %s22
      %s57 = sor.u32 %s55, %s56
      %p58 = scmp.eq.s32.totalorder %s57, 0
      %s60 = sadd.s32 %s59, 1
      %s61 = scalar_select %p58, %s59, %s60
      %p64 = pneg %p58
      %p65 = scmp.eq.s32.totalorder %s7, 3
      %p66 = por %p64, %p65
      %p67 = scmp.ne.s32.totalorder %s59, %s62
      %p68 = scmp.eq.s32.totalorder %s7, 0
      %p69 = por %p67, %p68
      %p70 = scmp.ne.s32.totalorder %s59, %s62
      %p71 = scmp.eq.s32.totalorder %s12, 3
      %p72 = por %p70, %p71
      %p73 = scmp.ne.s32.totalorder %s62, %s63
      %p74 = scmp.eq.s32.totalorder %s12, 0
      %p75 = por %p73, %p74
      %p76 = scmp.ne.s32.totalorder %s62, %s63
      %p77 = scmp.eq.s32.totalorder %s13, 3
      %p78 = por %p76, %p77
      %p80 = scmp.ne.s32.totalorder %s63, %s79
      %p81 = scmp.eq.s32.totalorder %s13, 0
      %p82 = por %p80, %p81
      %p83 = scmp.le.s32.totalorder 1, %s7
      %p84 = scmp.lt.s32.totalorder %s7, 5
      %p85 = pnand %p83, %p84
      %p86 = pneg %p85
      // Predicated region
      $region9: #{tpu_custom_call.1} parent=5 // pred_check
        _
      $region10: #{tpu_custom_call.1} parent=5 // pred_check_branch
        %88 = sbr.rel (%p85) target = $region12
      $region11: #{tpu_custom_call.1} parent=5 // pred_region
        %s89 = ssub.s32 %s7, 1
      $region12: #{tpu_custom_call.1} parent=5 // pred_fallthru
        _
      %p90 = scmp.lt.s32.totalorder %s7, 4
      // Predicated region
      $region13: #{tpu_custom_call.1} parent=5 // pred_check
        %p91 = pneg %p90
      $region14: #{tpu_custom_call.1} parent=5 // pred_check_branch
        %93 = sbr.rel (%p91) target = $region16
      $region15: #{tpu_custom_call.1} parent=5 // pred_region
        // Predicated region
        $region17: #{tpu_custom_call.1} parent=15 // pred_check
          %p94 = pneg %p41
        $region18: #{tpu_custom_call.1} parent=15 // pred_check_branch
          %96 = sbr.rel (%p94) target = $region20
        $region19: #{tpu_custom_call.1} parent=15 // pred_region
          %s97 = sand.u32 %s31, 1
          %s98 = sand.u32 %s31, 1
          %s99 = smul.addr %s98, 16
          %s100 = scalar_lea.vmem [#allocation2], %s99
          %s101 = smul.u32 2, %s14
          %s102 = smul.u32 2, %s15
          %s103 = smul.addr %s101, 8
          %s104 = sadd.s32 %s102, %s103
          %s105 = smul.addr %s104, 4
          %s106 = scalar_lea.vmem %s0, %s105
          // Predicated region
          $region21: #{tpu_custom_call.1} parent=19 // pred_check
            _
          $region22: #{tpu_custom_call.1} parent=19 // pred_check_branch
            %108 = sbr.rel (0) target = $region24
          $region23: #{tpu_custom_call.1} parent=19 // pred_region
            // Predicated region
            $region25: #{tpu_custom_call.1} parent=23 // pred_check
              _
            $region26: #{tpu_custom_call.1} parent=23 // pred_check_branch
              %110 = sbr.rel (0) target = $region28
            $region27: #{tpu_custom_call.1} parent=23 // pred_region
              // Predicated region
              $region40: #{tpu_custom_call.1} parent=27 // pred_check
                _
              $region41: #{tpu_custom_call.1} parent=27 // pred_check_branch
                %128 = sbr.rel (0) target = $region43
              $region42: #{tpu_custom_call.1} parent=27 // pred_region
                loop: start=0, step=1, limit=1
                $region44: #{tpu_custom_call.1} parent=42 // loop_pre_header
                  _
                $region45: #{tpu_custom_call.1} parent=42 // loop_header
                  %s130 = sphi 0, %s134
                  %p131 = scmp.ge.s32.totalorder %s130, 1
                  %s135 = sphi %s106, %s106
                  %s136 = sphi %s100, %s100
                $region46: #{tpu_custom_call.1} parent=42 // loop_header_branch
                  %133 = sbr.rel (%p131) target = $region50
                $region47: #{tpu_custom_call.1} parent=42 // loop_body
                  %v137 = vld [vmem:[%s135] sm:$0xff]
                  %138 = vst [vmem:[%s136] sm:$0xff] %v137
                  %v139 = vld [vmem:[%s135 + $0x20] sm:$0xff]
                  %140 = vst [vmem:[%s136 + $0x8] sm:$0xff] %v139
                $region48: #{tpu_custom_call.1} parent=42 // loop_footer
                  %s134 = sadd.s32 1, %s130
                $region49: #{tpu_custom_call.1} parent=42 // loop_footer_branch
                  %129 = sbr.rel target = $region45
                $region50: #{tpu_custom_call.1} parent=42 // loop_exit
                  _
              $region43: #{tpu_custom_call.1} parent=27 // pred_fallthru
                _
              // Predicated region
              $region51: #{tpu_custom_call.1} parent=27 // pred_check
                _
              $region52: #{tpu_custom_call.1} parent=27 // pred_check_branch
                %142 = sbr.rel target = $region54
              $region53: #{tpu_custom_call.1} parent=27 // pred_region
                _
              $region54: #{tpu_custom_call.1} parent=27 // pred_fallthru
                _
            $region28: #{tpu_custom_call.1} parent=23 // pred_fallthru
              _
            // Predicated region
            $region29: #{tpu_custom_call.1} parent=23 // pred_check
              _
            $region30: #{tpu_custom_call.1} parent=23 // pred_check_branch
              %112 = sbr.rel target = $region32
            $region31: #{tpu_custom_call.1} parent=23 // pred_region
              %s114 = ssub.s32 256, 1
              loop: start=0, step=1, limit=1
              $region33: #{tpu_custom_call.1} parent=31 // loop_pre_header
                _
              $region34: #{tpu_custom_call.1} parent=31 // loop_header
                %s116 = sphi 0, %s120
                %p117 = scmp.ge.s32.totalorder %s116, 1
                %s121 = sphi %s106, %s106
                %s122 = sphi %s100, %s100
              $region35: #{tpu_custom_call.1} parent=31 // loop_header_branch
                %119 = sbr.rel (%p117) target = $region39
              $region36: #{tpu_custom_call.1} parent=31 // loop_body
                %v123 = vld [vmem:[%s121] sm:%s114]
                %124 = vst [vmem:[%s122] sm:%s114] %v123
                %v125 = vld [vmem:[%s121 + $0x20] sm:%s114]
                %126 = vst [vmem:[%s122 + $0x8] sm:%s114] %v125
              $region37: #{tpu_custom_call.1} parent=31 // loop_footer
                %s120 = sadd.s32 1, %s116
              $region38: #{tpu_custom_call.1} parent=31 // loop_footer_branch
                %115 = sbr.rel target = $region34
              $region39: #{tpu_custom_call.1} parent=31 // loop_exit
                _
            $region32: #{tpu_custom_call.1} parent=23 // pred_fallthru
              _
          $region24: #{tpu_custom_call.1} parent=19 // pred_fallthru
            _
          %143 = vnop
        $region20: #{tpu_custom_call.1} parent=15 // pred_fallthru
          _
      $region16: #{tpu_custom_call.1} parent=5 // pred_fallthru
        _
      %p144 = scmp.le.s32.totalorder 1, %s7
      %p145 = scmp.lt.s32.totalorder %s7, 5
      %p146 = pnand %p144, %p145
      %p147 = pneg %p146
      // Predicated region
      $region55: #{tpu_custom_call.1} parent=5 // pred_check
        _
      $region56: #{tpu_custom_call.1} parent=5 // pred_check_branch
        %149 = sbr.rel (%p146) target = $region58
      $region57: #{tpu_custom_call.1} parent=5 // pred_region
        %s150 = ssub.s32 %s7, 1
        %s151 = sand.u32 %s34, 1
        %s152 = sand.u32 %s34, 1
        %s153 = smul.addr %s152, 16
        %s154 = scalar_lea.vmem [#allocation2], %s153
        // Predicated region
        $region59: #{tpu_custom_call.1} parent=57 // pred_check
          %p155 = pneg %p47
        $region60: #{tpu_custom_call.1} parent=57 // pred_check_branch
          %157 = sbr.rel (%p155) target = $region62
        $region61: #{tpu_custom_call.1} parent=57 // pred_region
          _
        $region62: #{tpu_custom_call.1} parent=57 // pred_fallthru
          _
        %s158 = sand.u32 %s34, 1
        %s159 = sand.u32 %s34, 1
        %s160 = smul.addr %s159, 16
        %s161 = scalar_lea.vmem [#allocation2], %s160
        %p162 = pneg %p47
        %p163 = pneg %p44
        %p164 = pneg %p75
        %p165 = pneg %p72
        %s166 = sand.u32 %s62, 1
        %s167 = sand.u32 %s62, 1
        %s168 = smul.addr %s167, 16
        %s169 = scalar_lea.vmem [#allocation3], %s168
        %s170 = smul.u32 2, %s16
        %s171 = smul.u32 2, %s17
        %s172 = smul.u32 2, %s16
        %v173 = vld [vmem:[%s154] sm:$0x77]
        %v174 = vld [vmem:[%s154 + $0x8] sm:$0x77]
        %175 = vst [vmem:[%s169] sm:$0x77] %v173
        %176 = vst [vmem:[%s169 + $0x8] sm:$0x77] %v174
        %s177 = sand.u32 %s62, 1
        %s178 = sand.u32 %s62, 1
        %s179 = smul.addr %s178, 16
        %s180 = scalar_lea.vmem [#allocation3], %s179
        // Predicated region
        $region63: #{tpu_custom_call.1} parent=57 // pred_check
          %p181 = pneg %p72
        $region64: #{tpu_custom_call.1} parent=57 // pred_check_branch
          %183 = sbr.rel (%p181) target = $region66
        $region65: #{tpu_custom_call.1} parent=57 // pred_region
          %s184 = smul.u32 2, %s16
          %s185 = smul.addr %s17, 2
          %s186 = smul.addr %s184, 8
          %s187 = sadd.s32 %s185, %s186
          %s188 = smul.addr %s187, 4
          %s189 = scalar_lea.vmem %s1, %s188
          // Predicated region
          $region67: #{tpu_custom_call.1} parent=65 // pred_check
            _
          $region68: #{tpu_custom_call.1} parent=65 // pred_check_branch
            %191 = sbr.rel (0) target = $region70
          $region69: #{tpu_custom_call.1} parent=65 // pred_region
            // Predicated region
            $region71: #{tpu_custom_call.1} parent=69 // pred_check
              _
            $region72: #{tpu_custom_call.1} parent=69 // pred_check_branch
              %193 = sbr.rel (0) target = $region74
            $region73: #{tpu_custom_call.1} parent=69 // pred_region
              // Predicated region
              $region86: #{tpu_custom_call.1} parent=73 // pred_check
                _
              $region87: #{tpu_custom_call.1} parent=73 // pred_check_branch
                %211 = sbr.rel (0) target = $region89
              $region88: #{tpu_custom_call.1} parent=73 // pred_region
                loop: start=0, step=1, limit=1
                $region90: #{tpu_custom_call.1} parent=88 // loop_pre_header
                  _
                $region91: #{tpu_custom_call.1} parent=88 // loop_header
                  %s213 = sphi 0, %s217
                  %p214 = scmp.ge.s32.totalorder %s213, 1
                  %s218 = sphi %s180, %s180
                  %s219 = sphi %s189, %s189
                $region92: #{tpu_custom_call.1} parent=88 // loop_header_branch
                  %216 = sbr.rel (%p214) target = $region96
                $region93: #{tpu_custom_call.1} parent=88 // loop_body
                  %v220 = vld [vmem:[%s218] sm:$0xff]
                  %221 = vst [vmem:[%s219] sm:$0xff] %v220
                  %v222 = vld [vmem:[%s218 + $0x8] sm:$0xff]
                  %223 = vst [vmem:[%s219 + $0x20] sm:$0xff] %v222
                $region94: #{tpu_custom_call.1} parent=88 // loop_footer
                  %s217 = sadd.s32 1, %s213
                $region95: #{tpu_custom_call.1} parent=88 // loop_footer_branch
                  %212 = sbr.rel target = $region91
                $region96: #{tpu_custom_call.1} parent=88 // loop_exit
                  _
              $region89: #{tpu_custom_call.1} parent=73 // pred_fallthru
                _
              // Predicated region
              $region97: #{tpu_custom_call.1} parent=73 // pred_check
                _
              $region98: #{tpu_custom_call.1} parent=73 // pred_check_branch
                %225 = sbr.rel target = $region100
              $region99: #{tpu_custom_call.1} parent=73 // pred_region
                _
              $region100: #{tpu_custom_call.1} parent=73 // pred_fallthru
                _
            $region74: #{tpu_custom_call.1} parent=69 // pred_fallthru
              _
            // Predicated region
            $region75: #{tpu_custom_call.1} parent=69 // pred_check
              _
            $region76: #{tpu_custom_call.1} parent=69 // pred_check_branch
              %195 = sbr.rel target = $region78
            $region77: #{tpu_custom_call.1} parent=69 // pred_region
              %s197 = ssub.s32 256, 1
              loop: start=0, step=1, limit=1
              $region79: #{tpu_custom_call.1} parent=77 // loop_pre_header
                _
              $region80: #{tpu_custom_call.1} parent=77 // loop_header
                %s199 = sphi 0, %s203
                %p200 = scmp.ge.s32.totalorder %s199, 1
                %s204 = sphi %s180, %s180
                %s205 = sphi %s189, %s189
              $region81: #{tpu_custom_call.1} parent=77 // loop_header_branch
                %202 = sbr.rel (%p200) target = $region85
              $region82: #{tpu_custom_call.1} parent=77 // loop_body
                %v206 = vld [vmem:[%s204] sm:%s197]
                %207 = vst [vmem:[%s205] sm:%s197] %v206
                %v208 = vld [vmem:[%s204 + $0x8] sm:%s197]
                %209 = vst [vmem:[%s205 + $0x20] sm:%s197] %v208
              $region83: #{tpu_custom_call.1} parent=77 // loop_footer
                %s203 = sadd.s32 1, %s199
              $region84: #{tpu_custom_call.1} parent=77 // loop_footer_branch
                %198 = sbr.rel target = $region80
              $region85: #{tpu_custom_call.1} parent=77 // loop_exit
                _
            $region78: #{tpu_custom_call.1} parent=69 // pred_fallthru
              _
          $region70: #{tpu_custom_call.1} parent=65 // pred_fallthru
            _
          %226 = vnop
        $region66: #{tpu_custom_call.1} parent=57 // pred_fallthru
          _
      $region58: #{tpu_custom_call.1} parent=5 // pred_fallthru
        _
      %p227 = scmp.le.s32.totalorder 2, %s7
      // Predicated region
      $region101: #{tpu_custom_call.1} parent=5 // pred_check
        %p228 = pneg %p227
      $region102: #{tpu_custom_call.1} parent=5 // pred_check_branch
        %230 = sbr.rel (%p228) target = $region104
      $region103: #{tpu_custom_call.1} parent=5 // pred_region
        %s231 = ssub.s32 %s7, 2
        // Predicated region
        $region105: #{tpu_custom_call.1} parent=103 // pred_check
          %p232 = pneg %p78
        $region106: #{tpu_custom_call.1} parent=103 // pred_check_branch
          %234 = sbr.rel (%p232) target = $region108
        $region107: #{tpu_custom_call.1} parent=103 // pred_region
          %s235 = sand.u32 %s63, 1
          %s236 = sand.u32 %s63, 1
          %s237 = smul.addr %s236, 16
          %s238 = scalar_lea.vmem [#allocation3], %s237
        $region108: #{tpu_custom_call.1} parent=103 // pred_fallthru
          _
      $region104: #{tpu_custom_call.1} parent=5 // pred_fallthru
        _
    $region6: #{tpu_custom_call.1} parent=1 // loop_footer
      %s11 = sadd.s32 1, %s7
    $region7: #{tpu_custom_call.1} parent=1 // loop_footer_branch
      %6 = sbr.rel target = $region3
    $region8: #{tpu_custom_call.1} parent=1 // loop_exit
      _

</llo_original>
